<compile_context>
chip_gen: v7x
topology: tpu7x:2x2x1
jax: 0.10.0
libtpu: 0.0.40
codegen_flags: <defaults>
</compile_context>

<pallas_src>
import math
import functools

import jax
import jax.numpy as jnp
from jax.experimental import pallas as pl
from jax.experimental.pallas import tpu as pltpu

# ---- deterministic module "parameters" (LIFPopulation.__init__ defaults) ----
DT            = 0.1
TAU_DECAY     = 100.0
TAU_S         = 10.0
REST_POT      = -62.0
RESET_POT     = -62.0
THRESHOLD     = -52.0
REFRAC_LENGTH = 5.0
DECAY         = math.exp(-DT / TAU_DECAY)        # membrane voltage decay
TRACE_DECAY   = math.exp(-DT / TAU_S)            # spike-trace decay
# TODO(synk): lower_bound is None by default; the optional clamp is omitted.
# TODO(synk): sum_input=False by default; the `summed` accumulator path is omitted.
# TODO(synk): PyTorch's in-place masking of x is not re-emitted; it is recomputable as
#             where(refrac_count_old > 0, 0, x) by any caller that needs it.

LANES = 128
MAX_BLOCK_ROWS = 1024   # (1024,128) f32 = 512 KiB per block-buffer; safe on v5e/v6e/v7x.


def _round_up(a: int, m: int) -> int:
    return (a + m - 1) // m * m


def _row_geometry(n: int):
    """Persistent padded 2-D (rows, 128) layout + row-block size for the grid."""
    rows = _round_up(n, LANES) // LANES
    if rows <= 64:
        padded_rows = _round_up(rows, 8)     # single full-extent block (always legal)
        block_rows = padded_rows
    else:
        # Multiple of 32: int8 spike output keeps its native (32,128) tile; splitting
        # into >= 2 row blocks lets "parallel" shard rows across v7x's two TCs.
        padded_rows = _round_up(rows, 32)
        block_rows = min(MAX_BLOCK_ROWS, _round_up(pl.cdiv(padded_rows, 2), 32))
    return padded_rows, block_rows


def _lif_multistep_kernel(x_ref, v_in, rc_in, tr_in,
                          v_ref, rc_ref, tr_ref, s_ref):
    # State is VMEM-resident across the whole time axis (output index_map constant in t);
    # initialise it from the input state tiles on the first timestep of each row block.
    @pl.when(pl.program_id(1) == 0)
    def _():
        v_ref[...]  = v_in[...]
        rc_ref[...] = rc_in[...]
        tr_ref[...] = tr_in[...]

    x  = x_ref[...]
    v  = v_ref[...]
    rc = rc_ref[...]
    tr = tr_ref[...]

    # compute_potential: decay toward rest, then add the refractory-masked input
    v = DECAY * (v - REST_POT) + REST_POT
    v = v + jnp.where(rc > 0.0, 0.0, x)

    # compute_spike
    s = v >= THRESHOLD

    # refractory_and_reset
    rc = rc - DT
    rc = jnp.where(s, REFRAC_LENGTH, rc)
    v  = jnp.where(s, RESET_POT, v)

    # NeuralPopulation.forward: spike trace (additive_spike_trace=False -> masked_fill 1)
    tr = tr * TRACE_DECAY
    tr = jnp.where(s, 1.0, tr)

    v_ref[...]  = v
    rc_ref[...] = rc
    tr_ref[...] = tr
    s_ref[...]  = s.astype(jnp.int8)     # narrow spike output; consumers use int8 directly


@functools.partial(jax.jit, static_argnames=("block_rows",), donate_argnums=(1, 2, 3))
def lif_population_run(x_seq, v, refrac_count, traces, *, block_rows):
    """Run T fused LIF steps on state kept in the padded (padded_rows, 128) layout.

    x_seq:  (T, padded_rows, 128) f32 input currents, one slab per timestep.
    v / refrac_count / traces: (padded_rows, 128) f32 persistent state; updated in
    place (input_output_aliases + donation).
    Returns (v, refrac_count, traces, spikes) with spikes (T, padded_rows, 128) int8.
    """
    T, padded_rows, lanes = x_seq.shape
    assert lanes == LANES
    row_blocks = pl.cdiv(padded_rows, block_rows)

    state_spec = pl.BlockSpec((block_rows, LANES), lambda i, t: (i, 0))        # t-invariant
    seq_spec   = pl.BlockSpec((None, block_rows, LANES), lambda i, t: (t, i, 0))
    f32_state  = jax.ShapeDtypeStruct((padded_rows, LANES), jnp.float32)
    s_shape    = jax.ShapeDtypeStruct((T, padded_rows, LANES), jnp.int8)

    padded_n = padded_rows * LANES
    cost = pl.CostEstimate(flops=10 * T * padded_n,
                           transcendentals=0,
                           bytes_accessed=padded_n * (5 * T + 24))

    return pl.pallas_call(
        _lif_multistep_kernel,
        out_shape=(f32_state, f32_state, f32_state, s_shape),
        grid=(row_blocks, T),
        in_specs=[seq_spec, state_spec, state_spec, state_spec],
        out_specs=(state_spec, state_spec, state_spec, seq_spec),
        input_output_aliases={1: 0, 2: 1, 3: 2},   # v, refrac_count, traces in place
        compiler_params=pltpu.CompilerParams(
            dimension_semantics=("parallel", "arbitrary")),
        cost_estimate=cost,
    )(x_seq, v, refrac_count, traces)


# ---- once-per-simulation layout helpers (pad at init, slice at the very end) ----
def flat_to_slab(flat, padded_rows, fill=0.0):
    n = flat.shape[-1]
    pad = padded_rows * LANES - n
    a = flat.astype(jnp.float32)
    if pad:
        a = jnp.pad(a, [(0, 0)] * (a.ndim - 1) + [(0, pad)], constant_values=fill)
    return a.reshape(a.shape[:-1] + (padded_rows, LANES))


def slab_to_flat(slab, n):
    return slab.reshape(slab.shape[:-2] + (-1,))[..., :n]


def _lif_step_reference(x, v, rc, tr):
    """Pure-JAX reference mirroring LIFPopulation.forward (default config)."""
    v = DECAY * (v - REST_POT) + REST_POT
    v = v + jnp.where(rc > 0.0, 0.0, x)
    s = v >= THRESHOLD
    rc = rc - DT
    rc = jnp.where(s, REFRAC_LENGTH, rc)
    v = jnp.where(s, RESET_POT, v)
    tr = tr * TRACE_DECAY
    tr = jnp.where(s, 1.0, tr)
    return v, rc, s, tr


if __name__ == "__main__":
    # 12000 neurons (not lane-aligned -> exercises lane padding, two row blocks and the
    # ragged 32-row tail block) simulated for 8 fused timesteps.
    n, T = 12000, 8
    key = jax.random.PRNGKey(0)
    # Input currents in multiples of 4 keep membrane potentials well away from the
    # -52 mV threshold, so the spike pattern is insensitive to f32 FMA-rounding details.
    x_seq = 4.0 * jax.random.randint(key, (T, n), 0, 4).astype(jnp.float32)

    v0  = jnp.full((n,), REST_POT, dtype=jnp.float32)                    # membrane potential
    rc0 = jnp.where(jnp.arange(n) % 7 == 0, 0.3, 0.0).astype(jnp.float32)  # some refractory
    tr0 = jnp.zeros((n,), dtype=jnp.float32)                             # spike traces

    # pure-JAX reference: T sequential steps on the flat state
    rv, rrc, rtr = v0, rc0, tr0
    ref_s = []
    for t in range(T):
        rv, rrc, st, rtr = _lif_step_reference(x_seq[t], rv, rrc, rtr)
        ref_s.append(st)
    ref_s = jnp.stack(ref_s)

    # kernel: pad once, run the fused T-step pallas_call once, unpad once.
    padded_rows, block_rows = _row_geometry(n)
    xs_p = flat_to_slab(x_seq, padded_rows)
    v_p  = flat_to_slab(v0,  padded_rows, fill=REST_POT)   # pad lanes rest quietly
    rc_p = flat_to_slab(rc0, padded_rows)
    tr_p = flat_to_slab(tr0, padded_rows)

    v_p, rc_p, tr_p, s_p = jax.block_until_ready(
        lif_population_run(xs_p, v_p, rc_p, tr_p, block_rows=block_rows))

    v_n  = slab_to_flat(v_p, n)
    rc_n = slab_to_flat(rc_p, n)
    tr_n = slab_to_flat(tr_p, n)
    s_n  = slab_to_flat(s_p, n)      # int8 spikes, one slab per timestep

    assert jnp.allclose(v_n, rv, atol=1e-4, rtol=1e-5)
    assert jnp.allclose(rc_n, rrc, atol=1e-5)
    assert bool(jnp.all((s_n != 0) == ref_s))
    assert jnp.allclose(tr_n, rtr, atol=1e-5)

    print("KERNEL_OK")
</pallas_src>

<mosaic_0001>
module attributes {stable_mosaic.version = 11 : i64} {
  func.func @_lif_multistep_kernel(%arg0: i32, %arg1: i32, %arg2: memref<1x64x128xf32, #tpu.memory_space<vmem>>, %arg3: memref<64x128xf32, #tpu.memory_space<vmem>>, %arg4: memref<64x128xf32, #tpu.memory_space<vmem>>, %arg5: memref<64x128xf32, #tpu.memory_space<vmem>>, %arg6: memref<64x128xf32, #tpu.memory_space<vmem>>, %arg7: memref<64x128xf32, #tpu.memory_space<vmem>>, %arg8: memref<64x128xf32, #tpu.memory_space<vmem>>, %arg9: memref<1x64x128xi8, #tpu.memory_space<vmem>>) attributes {dimension_semantics = [#tpu.dimension_semantics<parallel>, #tpu.dimension_semantics<arbitrary>], iteration_bounds = array<i64: 2, 8>, scalar_prefetch = 0 : i64, scratch_operands = 0 : i64, tpu.core_type = #tpu.core_type<tc>, window_params = [{transform_indices = @transform_0, window_bounds = array<i64: 1, 64, 128>}, {transform_indices = @transform_1, window_bounds = array<i64: 64, 128>}, {transform_indices = @transform_2, window_bounds = array<i64: 64, 128>}, {transform_indices = @transform_3, window_bounds = array<i64: 64, 128>}, {transform_indices = @transform_4, window_bounds = array<i64: 64, 128>}, {transform_indices = @transform_5, window_bounds = array<i64: 64, 128>}, {transform_indices = @transform_6, window_bounds = array<i64: 64, 128>}, {transform_indices = @transform_7, window_bounds = array<i64: 1, 64, 128>}]} {
    %c0_i32 = arith.constant 0 : i32
    %0 = arith.cmpi eq, %arg1, %c0_i32 : i32
    %1 = arith.extui %0 : i1 to i32
    %c0_i32_0 = arith.constant 0 : i32
    %2 = arith.cmpi ne, %1, %c0_i32_0 : i32
    scf.if %2 {
      %c0_28 = arith.constant 0 : index
      %c0_29 = arith.constant 0 : index
      %38 = vector.load %arg3[%c0_28, %c0_29] : memref<64x128xf32, #tpu.memory_space<vmem>>, vector<64x128xf32>
      %c0_30 = arith.constant 0 : index
      %c0_31 = arith.constant 0 : index
      %39 = vector.load %arg6[%c0_30, %c0_31] : memref<64x128xf32, #tpu.memory_space<vmem>>, vector<64x128xf32>
      tpu.vector_store %arg6[%c0_30, %c0_31], %38 {strides = array<i32>} : memref<64x128xf32, #tpu.memory_space<vmem>>, vector<64x128xf32>,
      %c0_32 = arith.constant 0 : index
      %c0_33 = arith.constant 0 : index
      %40 = vector.load %arg4[%c0_32, %c0_33] : memref<64x128xf32, #tpu.memory_space<vmem>>, vector<64x128xf32>
      %c0_34 = arith.constant 0 : index
      %c0_35 = arith.constant 0 : index
      %41 = vector.load %arg7[%c0_34, %c0_35] : memref<64x128xf32, #tpu.memory_space<vmem>>, vector<64x128xf32>
      tpu.vector_store %arg7[%c0_34, %c0_35], %40 {strides = array<i32>} : memref<64x128xf32, #tpu.memory_space<vmem>>, vector<64x128xf32>,
      %c0_36 = arith.constant 0 : index
      %c0_37 = arith.constant 0 : index
      %42 = vector.load %arg5[%c0_36, %c0_37] : memref<64x128xf32, #tpu.memory_space<vmem>>, vector<64x128xf32>
      %c0_38 = arith.constant 0 : index
      %c0_39 = arith.constant 0 : index
      %43 = vector.load %arg8[%c0_38, %c0_39] : memref<64x128xf32, #tpu.memory_space<vmem>>, vector<64x128xf32>
      tpu.vector_store %arg8[%c0_38, %c0_39], %42 {strides = array<i32>} : memref<64x128xf32, #tpu.memory_space<vmem>>, vector<64x128xf32>,
    } else {
    }
    %c0 = arith.constant 0 : index
    %c0_1 = arith.constant 0 : index
    %c0_2 = arith.constant 0 : index
    %3 = vector.load %arg2[%c0, %c0_1, %c0_2] : memref<1x64x128xf32, #tpu.memory_space<vmem>>, vector<1x64x128xf32>
    %4 = vector.shape_cast %3 : vector<1x64x128xf32> to vector<64x128xf32>
    %c0_3 = arith.constant 0 : index
    %c0_4 = arith.constant 0 : index
    %5 = vector.load %arg6[%c0_3, %c0_4] : memref<64x128xf32, #tpu.memory_space<vmem>>, vector<64x128xf32>
    %c0_5 = arith.constant 0 : index
    %c0_6 = arith.constant 0 : index
    %6 = vector.load %arg7[%c0_5, %c0_6] : memref<64x128xf32, #tpu.memory_space<vmem>>, vector<64x128xf32>
    %c0_7 = arith.constant 0 : index
    %c0_8 = arith.constant 0 : index
    %7 = vector.load %arg8[%c0_7, %c0_8] : memref<64x128xf32, #tpu.memory_space<vmem>>, vector<64x128xf32>
    %cst = arith.constant -6.200000e+01 : f32
    %8 = vector.broadcast %cst : f32 to vector<64x128xf32>
    %9 = arith.subf %5, %8 : vector<64x128xf32>
    %cst_9 = arith.constant 0.999000489 : f32
    %10 = vector.broadcast %cst_9 : f32 to vector<64x128xf32>
    %11 = arith.mulf %10, %9 : vector<64x128xf32>
    %cst_10 = arith.constant -6.200000e+01 : f32
    %12 = vector.broadcast %cst_10 : f32 to vector<64x128xf32>
    %13 = arith.addf %11, %12 : vector<64x128xf32>
    %cst_11 = arith.constant 0.000000e+00 : f32
    %14 = vector.broadcast %cst_11 : f32 to vector<64x128xf32>
    %15 = arith.cmpf ogt, %6, %14 : vector<64x128xf32>
    %cst_12 = arith.constant 0.000000e+00 : f32
    %16 = vector.broadcast %cst_12 : f32 to vector<64x128xf32>
    %17 = arith.select %15, %16, %4 : vector<64x128xi1>, vector<64x128xf32>
    %18 = arith.addf %13, %17 : vector<64x128xf32>
    %cst_13 = arith.constant -5.200000e+01 : f32
    %19 = vector.broadcast %cst_13 : f32 to vector<64x128xf32>
    %20 = arith.cmpf oge, %18, %19 : vector<64x128xf32>
    %cst_14 = arith.constant 1.000000e-01 : f32
    %21 = vector.broadcast %cst_14 : f32 to vector<64x128xf32>
    %22 = arith.subf %6, %21 : vector<64x128xf32>
    %cst_15 = arith.constant 5.000000e+00 : f32
    %23 = vector.broadcast %cst_15 : f32 to vector<64x128xf32>
    %24 = arith.select %20, %23, %22 : vector<64x128xi1>, vector<64x128xf32>
    %cst_16 = arith.constant -6.200000e+01 : f32
    %25 = vector.broadcast %cst_16 : f32 to vector<64x128xf32>
    %26 = arith.select %20, %25, %18 : vector<64x128xi1>, vector<64x128xf32>
    %cst_17 = arith.constant 0.990049839 : f32
    %27 = vector.broadcast %cst_17 : f32 to vector<64x128xf32>
    %28 = arith.mulf %7, %27 : vector<64x128xf32>
    %cst_18 = arith.constant 1.000000e+00 : f32
    %29 = vector.broadcast %cst_18 : f32 to vector<64x128xf32>
    %30 = arith.select %20, %29, %28 : vector<64x128xi1>, vector<64x128xf32>
    %c0_19 = arith.constant 0 : index
    %c0_20 = arith.constant 0 : index
    %31 = vector.load %arg6[%c0_19, %c0_20] : memref<64x128xf32, #tpu.memory_space<vmem>>, vector<64x128xf32>
    tpu.vector_store %arg6[%c0_19, %c0_20], %26 {strides = array<i32>} : memref<64x128xf32, #tpu.memory_space<vmem>>, vector<64x128xf32>,
    %c0_21 = arith.constant 0 : index
    %c0_22 = arith.constant 0 : index
    %32 = vector.load %arg7[%c0_21, %c0_22] : memref<64x128xf32, #tpu.memory_space<vmem>>, vector<64x128xf32>
    tpu.vector_store %arg7[%c0_21, %c0_22], %24 {strides = array<i32>} : memref<64x128xf32, #tpu.memory_space<vmem>>, vector<64x128xf32>,
    %c0_23 = arith.constant 0 : index
    %c0_24 = arith.constant 0 : index
    %33 = vector.load %arg8[%c0_23, %c0_24] : memref<64x128xf32, #tpu.memory_space<vmem>>, vector<64x128xf32>
    tpu.vector_store %arg8[%c0_23, %c0_24], %30 {strides = array<i32>} : memref<64x128xf32, #tpu.memory_space<vmem>>, vector<64x128xf32>,
    %34 = arith.extui %20 : vector<64x128xi1> to vector<64x128xi8>
    %c0_25 = arith.constant 0 : index
    %c0_26 = arith.constant 0 : index
    %c0_27 = arith.constant 0 : index
    %35 = vector.load %arg9[%c0_25, %c0_26, %c0_27] : memref<1x64x128xi8, #tpu.memory_space<vmem>>, vector<1x64x128xi8>
    %36 = vector.shape_cast %35 : vector<1x64x128xi8> to vector<64x128xi8>
    %37 = vector.shape_cast %34 : vector<64x128xi8> to vector<1x64x128xi8>
    tpu.vector_store %arg9[%c0_25, %c0_26, %c0_27], %37 {strides = array<i32>} : memref<1x64x128xi8, #tpu.memory_space<vmem>>, vector<1x64x128xi8>,
    return
  }
  func.func @transform_0(%arg0: i32, %arg1: i32) -> (i32, i32, i32) {
    %c0_i32 = arith.constant 0 : i32
    %c0_i32_0 = arith.constant 0 : i32
    return %arg1, %arg0, %c0_i32 : i32, i32, i32
  }
  func.func @transform_1(%arg0: i32, %arg1: i32) -> (i32, i32) {
    %c0_i32 = arith.constant 0 : i32
    %c0_i32_0 = arith.constant 0 : i32
    return %arg0, %c0_i32 : i32, i32
  }
  func.func @transform_2(%arg0: i32, %arg1: i32) -> (i32, i32) {
    %c0_i32 = arith.constant 0 : i32
    %c0_i32_0 = arith.constant 0 : i32
    return %arg0, %c0_i32 : i32, i32
  }
  func.func @transform_3(%arg0: i32, %arg1: i32) -> (i32, i32) {
    %c0_i32 = arith.constant 0 : i32
    %c0_i32_0 = arith.constant 0 : i32
    return %arg0, %c0_i32 : i32, i32
  }
  func.func @transform_4(%arg0: i32, %arg1: i32) -> (i32, i32) {
    %c0_i32 = arith.constant 0 : i32
    %c0_i32_0 = arith.constant 0 : i32
    return %arg0, %c0_i32 : i32, i32
  }
  func.func @transform_5(%arg0: i32, %arg1: i32) -> (i32, i32) {
    %c0_i32 = arith.constant 0 : i32
    %c0_i32_0 = arith.constant 0 : i32
    return %arg0, %c0_i32 : i32, i32
  }
  func.func @transform_6(%arg0: i32, %arg1: i32) -> (i32, i32) {
    %c0_i32 = arith.constant 0 : i32
    %c0_i32_0 = arith.constant 0 : i32
    return %arg0, %c0_i32 : i32, i32
  }
  func.func @transform_7(%arg0: i32, %arg1: i32) -> (i32, i32, i32) {
    %c0_i32 = arith.constant 0 : i32
    %c0_i32_0 = arith.constant 0 : i32
    return %arg1, %arg0, %c0_i32 : i32, i32, i32
  }
}

</mosaic_0001>

<llo_original>
// kernel: lif_population_run.1
$region0: #{lif_population_run.1}
  #allocation0 [shape = 'u32[]', space=smem, size = 0x4, offset = 0x4, fixed_abs, tag = 'smem constant byte address 0x4 - core index']
  #allocation1 [shape = 'u32[144,128]{1,0:T(1,128)}', space=vmem, size = 0x12000, scoped, tag = 'internal scratch']
  %s0 = inlined_call_operand.hbm [shape: f32[8,96,128], index: 0, kind: input, shape index: {}]
  %s1 = inlined_call_operand.hbm [shape: f32[96,128], index: 1, kind: input, shape index: {}, may-alias: {1,4}]
  %s2 = inlined_call_operand.hbm [shape: f32[96,128], index: 2, kind: input, shape index: {}, may-alias: {2,5}]
  %s3 = inlined_call_operand.hbm [shape: f32[96,128], index: 3, kind: input, shape index: {}, may-alias: {3,6}]
  %s4 = inlined_call_operand.hbm [shape: f32[96,128], index: 4, kind: output, shape index: {0}, may-alias: {1,4}]
  %s5 = inlined_call_operand.hbm [shape: f32[96,128], index: 5, kind: output, shape index: {1}, may-alias: {2,5}]
  %s6 = inlined_call_operand.hbm [shape: f32[96,128], index: 6, kind: output, shape index: {2}, may-alias: {3,6}]
  %s7 = inlined_call_operand.hbm [shape: s8[8,96,128], index: 7, kind: output, shape index: {3}]
  %8 = xla_tuple %s4, %s5, %s6, %s7
  %s9 = sld [smem:[#allocation0]]
  $region93: #{lif_population_run.1} parent=0
    _
  %s11 = ssub.s32 1, %s9
  %s12 = scalar_select 0, %s11, %s9
  $region1: #{lif_population_run.1} parent=0
    #allocation2 [shape = 'u8[65536]{0}', space=vmem, size = 0x10000, scoped, tag = 'input window, operand 0']
    #allocation3 [shape = 's32[2]{0}', space=sflag, size = 0x8, scoped, tag = 'scoped memory for lif_population_run.1']
    #allocation4 [shape = 's32[2]{0}', space=sflag, size = 0x8, scoped, tag = 'scoped memory for lif_population_run.1']
    #allocation5 [shape = 'u8[65536]{0}', space=vmem, size = 0x10000, scoped, tag = 'input window, operand 1']
    #allocation6 [shape = 's32[2]{0}', space=sflag, size = 0x8, scoped, tag = 'scoped memory for lif_population_run.1']
    #allocation7 [shape = 'u8[65536]{0}', space=vmem, size = 0x10000, scoped, tag = 'input window, operand 2']
    #allocation8 [shape = 'u8[65536]{0}', space=vmem, size = 0x10000, scoped, tag = 'input window, operand 3']
    #allocation9 [shape = 's32[2]{0}', space=sflag, size = 0x8, scoped, tag = 'scoped memory for lif_population_run.1']
    #allocation10 [shape = 'u8[65536]{0}', space=vmem, size = 0x10000, scoped, tag = 'output window, operand 0']
    #allocation11 [shape = 'u8[65536]{0}', space=vmem, size = 0x10000, scoped, tag = 'output window, operand 1']
    #allocation12 [shape = 's32[2]{0}', space=sflag, size = 0x8, scoped, tag = 'scoped memory for lif_population_run.1']
    #allocation13 [shape = 'u8[65536]{0}', space=vmem, size = 0x10000, scoped, tag = 'output window, operand 2']
    #allocation14 [shape = 'u8[16384]{0}', space=vmem, size = 0x4000, scoped, tag = 'output window, operand 3']
    #allocation15 [shape = 's32[2]{0}', space=sflag, size = 0x8, scoped, tag = 'scoped memory for lif_population_run.1']
    %13 = vsyncpa [#allocation3], 0
    %s14 = scalar_lea.sflag [#allocation3], 1
    %15 = vsyncpa %s14, 0
    %16 = vsyncpa [#allocation6], 0
    %s17 = scalar_lea.sflag [#allocation6], 1
    %18 = vsyncpa %s17, 0
    %19 = vsyncpa [#allocation9], 0
    %s20 = scalar_lea.sflag [#allocation9], 1
    %21 = vsyncpa %s20, 0
    %22 = vsyncpa [#allocation4], 0
    %s23 = scalar_lea.sflag [#allocation4], 1
    %24 = vsyncpa %s23, 0
    %25 = vsyncpa [#allocation12], 0
    %s26 = scalar_lea.sflag [#allocation12], 1
    %27 = vsyncpa %s26, 0
    %28 = vsyncpa [#allocation15], 0
    %s29 = scalar_lea.sflag [#allocation15], 1
    %30 = vsyncpa %s29, 0
    loop: start=0, step=1, limit=18
    $region2: #{lif_population_run.1} parent=1 // loop_pre_header
      _
    $region3: #{lif_population_run.1} parent=1 // loop_header
      %s32 = sphi 0, %s36
      %p33 = scmp.ge.s32.totalorder %s32, 18
      %s39 = sphi 0, %s51
      %s40 = sphi 0, %s47
      %s41 = sphi 0, %s39
      %s42 = sphi 0, %s40
      %s43 = sphi 0, %s41
      %s44 = sphi 0, %s42
      %s56 = sphi 0, %s58
      %s59 = sphi 0, %s56
      %s60 = sphi 0, %s59
      %s76 = sphi 0, %s60
      %s82 = sphi 0, %s84
      %s85 = sphi 0, %s82
      %s86 = sphi 0, %s85
      %s102 = sphi 0, %s86
      %s108 = sphi 0, %s110
      %s111 = sphi 0, %s108
      %s112 = sphi 0, %s111
      %s128 = sphi 0, %s112
      %s134 = sphi 0, %s136
      %s137 = sphi 0, %s134
      %s138 = sphi 0, %s137
      %s154 = sphi 0, %s138
      %s160 = sphi 0, %s162
      %s163 = sphi 0, %s160
      %s164 = sphi 0, %s163
      %s180 = sphi 0, %s164
      %s186 = sphi 0, %s188
      %s189 = sphi 0, %s186
      %s190 = sphi 0, %s189
      %s206 = sphi 0, %s190
      %s212 = sphi 0, %s214
      %s215 = sphi 0, %s212
      %s216 = sphi 0, %s215
      %s232 = sphi 0, %s216
      %s240 = sphi 0, %s242
      %s243 = sphi 0, %s240
      %s244 = sphi 0, %s243
      %s260 = sphi 0, %s244
    $region4: #{lif_population_run.1} parent=1 // loop_header_branch
      %35 = sbr.rel (%p33) target = $region8
    $region5: #{lif_population_run.1} parent=1 // loop_body
      %s37 = ssub.s32 %s32, 1
      %s38 = ssub.s32 %s32, 2
      %s45 = sadd.s32 1, %s40
      %p46 = scmp.ge.s32.totalorder %s45, 8
      %s47 = scalar_select %p46, 0, %s45
      %s48 = sadd.s32 1, %s39
      %s49 = scalar_select %p46, %s48, %s39
      %p50 = scmp.ge.s32.totalorder %s49, 2
      %s51 = scalar_select %p50, 0, %s49
      %s52 = ssub.s32 %s40, %s47
      %s53 = ssub.s32 %s39, %s51
      %s54 = sor.u32 %s52, %s53
      %p55 = scmp.eq.s32.totalorder %s54, 0
      %s57 = sadd.s32 %s56, 1
      %s58 = scalar_select %p55, %s56, %s57
      %p61 = pneg %p55
      %p62 = scmp.eq.s32.totalorder %s32, 15
      %p63 = por %p61, %p62
      %p64 = scmp.ne.s32.totalorder %s56, %s59
      %p65 = scmp.eq.s32.totalorder %s32, 0
      %p66 = por %p64, %p65
      %p67 = scmp.ne.s32.totalorder %s56, %s59
      %p68 = scmp.eq.s32.totalorder %s37, 15
      %p69 = por %p67, %p68
      %p70 = scmp.ne.s32.totalorder %s59, %s60
      %p71 = scmp.eq.s32.totalorder %s37, 0
      %p72 = por %p70, %p71
      %p73 = scmp.ne.s32.totalorder %s59, %s60
      %p74 = scmp.eq.s32.totalorder %s38, 15
      %p75 = por %p73, %p74
      %p77 = scmp.ne.s32.totalorder %s60, %s76
      %p78 = scmp.eq.s32.totalorder %s38, 0
      %p79 = por %p77, %p78
      %s80 = ssub.s32 %s39, %s51
      %p81 = scmp.eq.s32.totalorder %s80, 0
      %s83 = sadd.s32 %s82, 1
      %s84 = scalar_select %p81, %s82, %s83
      %p87 = pneg %p81
      %p88 = scmp.eq.s32.totalorder %s32, 15
      %p89 = por %p87, %p88
      %p90 = scmp.ne.s32.totalorder %s82, %s85
      %p91 = scmp.eq.s32.totalorder %s32, 0
      %p92 = por %p90, %p91
      %p93 = scmp.ne.s32.totalorder %s82, %s85
      %p94 = scmp.eq.s32.totalorder %s37, 15
      %p95 = por %p93, %p94
      %p96 = scmp.ne.s32.totalorder %s85, %s86
      %p97 = scmp.eq.s32.totalorder %s37, 0
      %p98 = por %p96, %p97
      %p99 = scmp.ne.s32.totalorder %s85, %s86
      %p100 = scmp.eq.s32.totalorder %s38, 15
      %p101 = por %p99, %p100
      %p103 = scmp.ne.s32.totalorder %s86, %s102
      %p104 = scmp.eq.s32.totalorder %s38, 0
      %p105 = por %p103, %p104
      %s106 = ssub.s32 %s39, %s51
      %p107 = scmp.eq.s32.totalorder %s106, 0
      %s109 = sadd.s32 %s108, 1
      %s110 = scalar_select %p107, %s108, %s109
      %p113 = pneg %p107
      %p114 = scmp.eq.s32.totalorder %s32, 15
      %p115 = por %p113, %p114
      %p116 = scmp.ne.s32.totalorder %s108, %s111
      %p117 = scmp.eq.s32.totalorder %s32, 0
      %p118 = por %p116, %p117
      %p119 = scmp.ne.s32.totalorder %s108, %s111
      %p120 = scmp.eq.s32.totalorder %s37, 15
      %p121 = por %p119, %p120
      %p122 = scmp.ne.s32.totalorder %s111, %s112
      %p123 = scmp.eq.s32.totalorder %s37, 0
      %p124 = por %p122, %p123
      %p125 = scmp.ne.s32.totalorder %s111, %s112
      %p126 = scmp.eq.s32.totalorder %s38, 15
      %p127 = por %p125, %p126
      %p129 = scmp.ne.s32.totalorder %s112, %s128
      %p130 = scmp.eq.s32.totalorder %s38, 0
      %p131 = por %p129, %p130
      %s132 = ssub.s32 %s39, %s51
      %p133 = scmp.eq.s32.totalorder %s132, 0
      %s135 = sadd.s32 %s134, 1
      %s136 = scalar_select %p133, %s134, %s135
      %p139 = pneg %p133
      %p140 = scmp.eq.s32.totalorder %s32, 15
      %p141 = por %p139, %p140
      %p142 = scmp.ne.s32.totalorder %s134, %s137
      %p143 = scmp.eq.s32.totalorder %s32, 0
      %p144 = por %p142, %p143
      %p145 = scmp.ne.s32.totalorder %s134, %s137
      %p146 = scmp.eq.s32.totalorder %s37, 15
      %p147 = por %p145, %p146
      %p148 = scmp.ne.s32.totalorder %s137, %s138
      %p149 = scmp.eq.s32.totalorder %s37, 0
      %p150 = por %p148, %p149
      %p151 = scmp.ne.s32.totalorder %s137, %s138
      %p152 = scmp.eq.s32.totalorder %s38, 15
      %p153 = por %p151, %p152
      %p155 = scmp.ne.s32.totalorder %s138, %s154
      %p156 = scmp.eq.s32.totalorder %s38, 0
      %p157 = por %p155, %p156
      %s158 = ssub.s32 %s39, %s51
      %p159 = scmp.eq.s32.totalorder %s158, 0
      %s161 = sadd.s32 %s160, 1
      %s162 = scalar_select %p159, %s160, %s161
      %p165 = pneg %p159
      %p166 = scmp.eq.s32.totalorder %s32, 15
      %p167 = por %p165, %p166
      %p168 = scmp.ne.s32.totalorder %s160, %s163
      %p169 = scmp.eq.s32.totalorder %s32, 0
      %p170 = por %p168, %p169
      %p171 = scmp.ne.s32.totalorder %s160, %s163
      %p172 = scmp.eq.s32.totalorder %s37, 15
      %p173 = por %p171, %p172
      %p174 = scmp.ne.s32.totalorder %s163, %s164
      %p175 = scmp.eq.s32.totalorder %s37, 0
      %p176 = por %p174, %p175
      %p177 = scmp.ne.s32.totalorder %s163, %s164
      %p178 = scmp.eq.s32.totalorder %s38, 15
      %p179 = por %p177, %p178
      %p181 = scmp.ne.s32.totalorder %s164, %s180
      %p182 = scmp.eq.s32.totalorder %s38, 0
      %p183 = por %p181, %p182
      %s184 = ssub.s32 %s39, %s51
      %p185 = scmp.eq.s32.totalorder %s184, 0
      %s187 = sadd.s32 %s186, 1
      %s188 = scalar_select %p185, %s186, %s187
      %p191 = pneg %p185
      %p192 = scmp.eq.s32.totalorder %s32, 15
      %p193 = por %p191, %p192
      %p194 = scmp.ne.s32.totalorder %s186, %s189
      %p195 = scmp.eq.s32.totalorder %s32, 0
      %p196 = por %p194, %p195
      %p197 = scmp.ne.s32.totalorder %s186, %s189
      %p198 = scmp.eq.s32.totalorder %s37, 15
      %p199 = por %p197, %p198
      %p200 = scmp.ne.s32.totalorder %s189, %s190
      %p201 = scmp.eq.s32.totalorder %s37, 0
      %p202 = por %p200, %p201
      %p203 = scmp.ne.s32.totalorder %s189, %s190
      %p204 = scmp.eq.s32.totalorder %s38, 15
      %p205 = por %p203, %p204
      %p207 = scmp.ne.s32.totalorder %s190, %s206
      %p208 = scmp.eq.s32.totalorder %s38, 0
      %p209 = por %p207, %p208
      %s210 = ssub.s32 %s39, %s51
      %p211 = scmp.eq.s32.totalorder %s210, 0
      %s213 = sadd.s32 %s212, 1
      %s214 = scalar_select %p211, %s212, %s213
      %p217 = pneg %p211
      %p218 = scmp.eq.s32.totalorder %s32, 15
      %p219 = por %p217, %p218
      %p220 = scmp.ne.s32.totalorder %s212, %s215
      %p221 = scmp.eq.s32.totalorder %s32, 0
      %p222 = por %p220, %p221
      %p223 = scmp.ne.s32.totalorder %s212, %s215
      %p224 = scmp.eq.s32.totalorder %s37, 15
      %p225 = por %p223, %p224
      %p226 = scmp.ne.s32.totalorder %s215, %s216
      %p227 = scmp.eq.s32.totalorder %s37, 0
      %p228 = por %p226, %p227
      %p229 = scmp.ne.s32.totalorder %s215, %s216
      %p230 = scmp.eq.s32.totalorder %s38, 15
      %p231 = por %p229, %p230
      %p233 = scmp.ne.s32.totalorder %s216, %s232
      %p234 = scmp.eq.s32.totalorder %s38, 0
      %p235 = por %p233, %p234
      %s236 = ssub.s32 %s40, %s47
      %s237 = ssub.s32 %s39, %s51
      %s238 = sor.u32 %s236, %s237
      %p239 = scmp.eq.s32.totalorder %s238, 0
      %s241 = sadd.s32 %s240, 1
      %s242 = scalar_select %p239, %s240, %s241
      %p245 = pneg %p239
      %p246 = scmp.eq.s32.totalorder %s32, 15
      %p247 = por %p245, %p246
      %p248 = scmp.ne.s32.totalorder %s240, %s243
      %p249 = scmp.eq.s32.totalorder %s32, 0
      %p250 = por %p248, %p249
      %p251 = scmp.ne.s32.totalorder %s240, %s243
      %p252 = scmp.eq.s32.totalorder %s37, 15
      %p253 = por %p251, %p252
      %p254 = scmp.ne.s32.totalorder %s243, %s244
      %p255 = scmp.eq.s32.totalorder %s37, 0
      %p256 = por %p254, %p255
      %p257 = scmp.ne.s32.totalorder %s243, %s244
      %p258 = scmp.eq.s32.totalorder %s38, 15
      %p259 = por %p257, %p258
      %p261 = scmp.ne.s32.totalorder %s244, %s260
      %p262 = scmp.eq.s32.totalorder %s38, 0
      %p263 = por %p261, %p262
      %p264 = scmp.le.s32.totalorder 1, %s32
      %p265 = scmp.lt.s32.totalorder %s32, 17
      %p266 = pnand %p264, %p265
      %p267 = pneg %p266
      // Predicated region
      $region9: #{lif_population_run.1} parent=5 // pred_check
        _
      $region10: #{lif_population_run.1} parent=5 // pred_check_branch
        %269 = sbr.rel (%p266) target = $region12
      $region11: #{lif_population_run.1} parent=5 // pred_region
        %s270 = ssub.s32 %s32, 1
      $region12: #{lif_population_run.1} parent=5 // pred_fallthru
        _
      %p271 = scmp.lt.s32.totalorder %s32, 16
      // Predicated region
      $region13: #{lif_population_run.1} parent=5 // pred_check
        %p272 = pneg %p271
      $region14: #{lif_population_run.1} parent=5 // pred_check_branch
        %274 = sbr.rel (%p272) target = $region16
      $region15: #{lif_population_run.1} parent=5 // pred_region
        // Predicated region
        $region17: #{lif_population_run.1} parent=15 // pred_check
          %p275 = pneg %p66
        $region18: #{lif_population_run.1} parent=15 // pred_check_branch
          %277 = sbr.rel (%p275) target = $region20
        $region19: #{lif_population_run.1} parent=15 // pred_region
          %s278 = sand.u32 %s56, 1
          %s279 = scalar_lea.sflag [#allocation3], %s278
          %s280 = sand.u32 %s56, 1
          %s281 = smul.addr %s280, 64
          %s282 = scalar_lea.vmem [#allocation2], %s281
          %s283 = smul.u32 8, %s39
          %s284 = ssub.s32 12, %s283
          %p285 = scmp.lt.s32.totalorder %s284, 8
          %s286 = scalar_select %p285, %s284, 8
          %s287 = smul.u32 128, %s286
          %s289 = ssub.s32 1024, %s287
          %290 = vsyncadd %s279, %s289
          %p291 = scmp.ne.s32.totalorder 0, %s287
          %s292 = smul.addr %s40, 12
          %s293 = sadd.s32 %s283, %s292
          %s294 = smul.addr %s293, 128
          %s295 = scalar_lea.hbm %s0, %s294
          %s296 = smul.u32 8, %s286
          %s297 = sshll.u32 %s282, 4
          %s298 = int_to_ptr.vmem [resolvable:$true] %s297
          %s299 = sshll.u32 %s296, 4
          %303 = dma.hbm_to_vmem [thread:$0]  (%p291), %s295, %s299, %s298, %s279, 128, 128, 8
        $region20: #{lif_population_run.1} parent=15 // pred_fallthru
          _
        // Predicated region
        $region21: #{lif_population_run.1} parent=15 // pred_check
          %p304 = pneg %p92
        $region22: #{lif_population_run.1} parent=15 // pred_check_branch
          %306 = sbr.rel (%p304) target = $region24
        $region23: #{lif_population_run.1} parent=15 // pred_region
          %s307 = sand.u32 %s32, 1
          %s308 = scalar_lea.sflag [#allocation6], %s307
          %s309 = sand.u32 %s82, 1
          %s310 = smul.addr %s309, 64
          %s311 = scalar_lea.vmem [#allocation5], %s310
          %s312 = smul.u32 8, %s39
          %s313 = ssub.s32 12, %s312
          %p314 = scmp.lt.s32.totalorder %s313, 8
          %s315 = scalar_select %p314, %s313, 8
          %s316 = smul.u32 128, %s315
          %s318 = ssub.s32 1024, %s316
          %319 = vsyncadd %s308, %s318
          %p320 = scmp.ne.s32.totalorder 0, %s316
          %s321 = smul.addr %s312, 128
          %s322 = scalar_lea.hbm %s1, %s321
          %s323 = smul.u32 8, %s315
          %s324 = sshll.u32 %s311, 4
          %s325 = int_to_ptr.vmem [resolvable:$true] %s324
          %s326 = sshll.u32 %s323, 4
          %330 = dma.hbm_to_vmem [thread:$0]  (%p320), %s322, %s326, %s325, %s308, 128, 128, 8
        $region24: #{lif_population_run.1} parent=15 // pred_fallthru
          _
        // Predicated region
        $region25: #{lif_population_run.1} parent=15 // pred_check
          %p331 = pneg %p118
        $region26: #{lif_population_run.1} parent=15 // pred_check_branch
          %333 = sbr.rel (%p331) target = $region28
        $region27: #{lif_population_run.1} parent=15 // pred_region
          %s334 = sand.u32 %s32, 1
          %s335 = scalar_lea.sflag [#allocation6], %s334
          %s336 = sand.u32 %s108, 1
          %s337 = smul.addr %s336, 64
          %s338 = scalar_lea.vmem [#allocation7], %s337
          %s339 = smul.u32 8, %s39
          %s340 = ssub.s32 12, %s339
          %p341 = scmp.lt.s32.totalorder %s340, 8
          %s342 = scalar_select %p341, %s340, 8
          %s343 = smul.u32 128, %s342
          %s345 = ssub.s32 1024, %s343
          %346 = vsyncadd %s335, %s345
          %p347 = scmp.ne.s32.totalorder 0, %s343
          %s348 = smul.addr %s339, 128
          %s349 = scalar_lea.hbm %s2, %s348
          %s350 = smul.u32 8, %s342
          %s351 = sshll.u32 %s338, 4
          %s352 = int_to_ptr.vmem [resolvable:$true] %s351
          %s353 = sshll.u32 %s350, 4
          %357 = dma.hbm_to_vmem [thread:$0]  (%p347), %s349, %s353, %s352, %s335, 128, 128, 8
        $region28: #{lif_population_run.1} parent=15 // pred_fallthru
          _
        // Predicated region
        $region29: #{lif_population_run.1} parent=15 // pred_check
          %p358 = pneg %p144
        $region30: #{lif_population_run.1} parent=15 // pred_check_branch
          %360 = sbr.rel (%p358) target = $region32
        $region31: #{lif_population_run.1} parent=15 // pred_region
          %s361 = sand.u32 %s134, 1
          %s362 = scalar_lea.sflag [#allocation9], %s361
          %s363 = sand.u32 %s134, 1
          %s364 = smul.addr %s363, 64
          %s365 = scalar_lea.vmem [#allocation8], %s364
          %s366 = smul.u32 8, %s39
          %s367 = ssub.s32 12, %s366
          %p368 = scmp.lt.s32.totalorder %s367, 8
          %s369 = scalar_select %p368, %s367, 8
          %s370 = smul.u32 128, %s369
          %s372 = ssub.s32 1024, %s370
          %373 = vsyncadd %s362, %s372
          %p374 = scmp.ne.s32.totalorder 0, %s370
          %s375 = smul.addr %s366, 128
          %s376 = scalar_lea.hbm %s3, %s375
          %s377 = smul.u32 8, %s369
          %s378 = sshll.u32 %s365, 4
          %s379 = int_to_ptr.vmem [resolvable:$true] %s378
          %s380 = sshll.u32 %s377, 4
          %384 = dma.hbm_to_vmem [thread:$0]  (%p374), %s376, %s380, %s379, %s362, 128, 128, 8
        $region32: #{lif_population_run.1} parent=15 // pred_fallthru
          _
      $region16: #{lif_population_run.1} parent=5 // pred_fallthru
        _
      %p385 = scmp.le.s32.totalorder 1, %s32
      %p386 = scmp.lt.s32.totalorder %s32, 17
      %p387 = pnand %p385, %p386
      %p388 = pneg %p387
      // Predicated region
      $region33: #{lif_population_run.1} parent=5 // pred_check
        _
      $region34: #{lif_population_run.1} parent=5 // pred_check_branch
        %390 = sbr.rel (%p387) target = $region36
      $region35: #{lif_population_run.1} parent=5 // pred_region
        %s391 = ssub.s32 %s32, 1
        %s392 = sand.u32 %s59, 1
        %s393 = scalar_lea.sflag [#allocation3], %s392
        %s394 = sand.u32 %s59, 1
        %s395 = smul.addr %s394, 64
        %s396 = scalar_lea.vmem [#allocation2], %s395
        // Predicated region
        $region37: #{lif_population_run.1} parent=35 // pred_check
          %p397 = pneg %p72
        $region38: #{lif_population_run.1} parent=35 // pred_check_branch
          %399 = sbr.rel (%p397) target = $region40
        $region39: #{lif_population_run.1} parent=35 // pred_region
          %400 = dma.done %s393, 1024
        $region40: #{lif_population_run.1} parent=35 // pred_fallthru
          _
        %s401 = sand.u32 %s37, 1
        %s402 = scalar_lea.sflag [#allocation6], %s401
        %s403 = sand.u32 %s85, 1
        %s404 = smul.addr %s403, 64
        %s405 = scalar_lea.vmem [#allocation5], %s404
        // Predicated region
        $region41: #{lif_population_run.1} parent=35 // pred_check
          %p406 = pneg %p98
        $region42: #{lif_population_run.1} parent=35 // pred_check_branch
          %408 = sbr.rel (%p406) target = $region44
        $region43: #{lif_population_run.1} parent=35 // pred_region
          %409 = dma.done %s402, 1024
        $region44: #{lif_population_run.1} parent=35 // pred_fallthru
          _
        %s410 = sand.u32 %s37, 1
        %s411 = scalar_lea.sflag [#allocation6], %s410
        %s412 = sand.u32 %s111, 1
        %s413 = smul.addr %s412, 64
        %s414 = scalar_lea.vmem [#allocation7], %s413
        // Predicated region
        $region45: #{lif_population_run.1} parent=35 // pred_check
          %p415 = pneg %p124
        $region46: #{lif_population_run.1} parent=35 // pred_check_branch
          %417 = sbr.rel (%p415) target = $region48
        $region47: #{lif_population_run.1} parent=35 // pred_region
          %418 = dma.done %s411, 1024
        $region48: #{lif_population_run.1} parent=35 // pred_fallthru
          _
        %s419 = sand.u32 %s137, 1
        %s420 = scalar_lea.sflag [#allocation9], %s419
        %s421 = sand.u32 %s137, 1
        %s422 = smul.addr %s421, 64
        %s423 = scalar_lea.vmem [#allocation8], %s422
        // Predicated region
        $region49: #{lif_population_run.1} parent=35 // pred_check
          %p424 = pneg %p150
        $region50: #{lif_population_run.1} parent=35 // pred_check_branch
          %426 = sbr.rel (%p424) target = $region52
        $region51: #{lif_population_run.1} parent=35 // pred_region
          %427 = dma.done %s420, 1024
        $region52: #{lif_population_run.1} parent=35 // pred_fallthru
          _
        %s428 = sand.u32 %s59, 1
        %s429 = scalar_lea.sflag [#allocation3], %s428
        %s430 = sand.u32 %s59, 1
        %s431 = smul.addr %s430, 64
        %s432 = scalar_lea.vmem [#allocation2], %s431
        %p433 = pneg %p72
        %p434 = pneg %p69
        %s435 = sand.u32 %s37, 1
        %s436 = scalar_lea.sflag [#allocation6], %s435
        %s437 = sand.u32 %s85, 1
        %s438 = smul.addr %s437, 64
        %s439 = scalar_lea.vmem [#allocation5], %s438
        %p440 = pneg %p98
        %p441 = pneg %p95
        %s442 = sand.u32 %s37, 1
        %s443 = scalar_lea.sflag [#allocation6], %s442
        %s444 = sand.u32 %s111, 1
        %s445 = smul.addr %s444, 64
        %s446 = scalar_lea.vmem [#allocation7], %s445
        %p447 = pneg %p124
        %p448 = pneg %p121
        %s449 = sand.u32 %s137, 1
        %s450 = scalar_lea.sflag [#allocation9], %s449
        %s451 = sand.u32 %s137, 1
        %s452 = smul.addr %s451, 64
        %s453 = scalar_lea.vmem [#allocation8], %s452
        %p454 = pneg %p150
        %p455 = pneg %p147
        %p456 = pneg %p176
        %p457 = pneg %p173
        %s458 = sand.u32 %s163, 1
        %s459 = scalar_lea.sflag [#allocation4], %s458
        %s460 = sand.u32 %s163, 1
        %s461 = smul.addr %s460, 64
        %s462 = scalar_lea.vmem [#allocation10], %s461
        %p463 = pneg %p202
        %p464 = pneg %p199
        %s465 = sand.u32 %s37, 1
        %s466 = scalar_lea.sflag [#allocation12], %s465
        %s467 = sand.u32 %s189, 1
        %s468 = smul.addr %s467, 64
        %s469 = scalar_lea.vmem [#allocation11], %s468
        %p470 = pneg %p228
        %p471 = pneg %p225
        %s472 = sand.u32 %s37, 1
        %s473 = scalar_lea.sflag [#allocation12], %s472
        %s474 = sand.u32 %s215, 1
        %s475 = smul.addr %s474, 64
        %s476 = scalar_lea.vmem [#allocation13], %s475
        %p477 = pneg %p256
        %p478 = pneg %p253
        %s479 = sand.u32 %s243, 1
        %s480 = scalar_lea.sflag [#allocation15], %s479
        %s481 = sand.u32 %s243, 1
        %s482 = smul.addr %s481, 16
        %s483 = scalar_lea.vmem [#allocation14], %s482
        %s484 = smul.u32 8, %s41
        %s485 = ssub.s32 12, %s484
        %p486 = scmp.lt.s32.totalorder %s485, 8
        %s487 = scalar_select %p486, %s485, 8
        %s488 = smul.u32 128, %s487
        %s489 = smul.u32 8, %s41
        %s490 = ssub.s32 12, %s489
        %p491 = scmp.lt.s32.totalorder %s490, 8
        %s492 = scalar_select %p491, %s490, 8
        %s493 = smul.u32 128, %s492
        %s494 = smul.u32 8, %s41
        %s495 = ssub.s32 12, %s494
        %p496 = scmp.lt.s32.totalorder %s495, 8
        %s497 = scalar_select %p496, %s495, 8
        %s498 = smul.u32 128, %s497
        %s499 = smul.u32 8, %s41
        %s500 = ssub.s32 12, %s499
        %p501 = scmp.lt.s32.totalorder %s500, 8
        %s502 = scalar_select %p501, %s500, 8
        %s503 = smul.u32 128, %s502
        %s504 = smul.u32 8, %s41
        %s505 = ssub.s32 12, %s504
        %p506 = scmp.lt.s32.totalorder %s505, 8
        %s507 = scalar_select %p506, %s505, 8
        %s508 = smul.u32 128, %s507
        %s509 = smul.u32 8, %s41
        %s510 = ssub.s32 12, %s509
        %p511 = scmp.lt.s32.totalorder %s510, 8
        %s512 = scalar_select %p511, %s510, 8
        %s513 = smul.u32 128, %s512
        %s514 = smul.u32 8, %s41
        %s515 = ssub.s32 12, %s514
        %p516 = scmp.lt.s32.totalorder %s515, 8
        %s517 = scalar_select %p516, %s515, 8
        %s518 = smul.u32 128, %s517
        %s519 = smul.u32 2, %s41
        %s520 = ssub.s32 3, %s519
        %p521 = scmp.lt.s32.totalorder %s520, 2
        %s522 = scalar_select %p521, %s520, 2
        %s523 = smul.u32 128, %s522
        %p526 = scmp.eq.s32.totalorder %s42, 0
        // Predicated region
        $region53: #{lif_population_run.1} parent=35 // pred_check
          %p527 = pneg %p526
        $region54: #{lif_population_run.1} parent=35 // pred_check_branch
          %529 = sbr.rel (%p527) target = $region56
        $region55: #{lif_population_run.1} parent=35 // pred_region
          %v530 = vld [vmem:[%s405] sm:$0xff]
          %v531 = vld [vmem:[%s405 + $0x8] sm:$0xff]
          %v532 = vld [vmem:[%s405 + $0x10] sm:$0xff]
          %v533 = vld [vmem:[%s405 + $0x18] sm:$0xff]
          %v534 = vld [vmem:[%s405 + $0x20] sm:$0xff]
          %v535 = vld [vmem:[%s405 + $0x28] sm:$0xff]
          %v536 = vld [vmem:[%s405 + $0x30] sm:$0xff]
          %v537 = vld [vmem:[%s405 + $0x38] sm:$0xff]
          %538 = vst [vmem:[%s462] sm:$0xff] %v530
          %539 = vst [vmem:[%s462 + $0x8] sm:$0xff] %v531
          %540 = vst [vmem:[%s462 + $0x10] sm:$0xff] %v532
          %541 = vst [vmem:[%s462 + $0x18] sm:$0xff] %v533
          %542 = vst [vmem:[%s462 + $0x20] sm:$0xff] %v534
          %543 = vst [vmem:[%s462 + $0x28] sm:$0xff] %v535
          %544 = vst [vmem:[%s462 + $0x30] sm:$0xff] %v536
          %545 = vst [vmem:[%s462 + $0x38] sm:$0xff] %v537
          %v546 = vld [vmem:[%s414] sm:$0xff]
          %v547 = vld [vmem:[%s414 + $0x8] sm:$0xff]
          %v548 = vld [vmem:[%s414 + $0x10] sm:$0xff]
          %v549 = vld [vmem:[%s414 + $0x18] sm:$0xff]
          %v550 = vld [vmem:[%s414 + $0x20] sm:$0xff]
          %v551 = vld [vmem:[%s414 + $0x28] sm:$0xff]
          %v552 = vld [vmem:[%s414 + $0x30] sm:$0xff]
          %v553 = vld [vmem:[%s414 + $0x38] sm:$0xff]
          %554 = vst [vmem:[%s469] sm:$0xff] %v546
          %555 = vst [vmem:[%s469 + $0x8] sm:$0xff] %v547
          %556 = vst [vmem:[%s469 + $0x10] sm:$0xff] %v548
          %557 = vst [vmem:[%s469 + $0x18] sm:$0xff] %v549
          %558 = vst [vmem:[%s469 + $0x20] sm:$0xff] %v550
          %559 = vst [vmem:[%s469 + $0x28] sm:$0xff] %v551
          %560 = vst [vmem:[%s469 + $0x30] sm:$0xff] %v552
          %561 = vst [vmem:[%s469 + $0x38] sm:$0xff] %v553
          %v562 = vld [vmem:[%s423] sm:$0xff]
          %v563 = vld [vmem:[%s423 + $0x8] sm:$0xff]
          %v564 = vld [vmem:[%s423 + $0x10] sm:$0xff]
          %v565 = vld [vmem:[%s423 + $0x18] sm:$0xff]
          %v566 = vld [vmem:[%s423 + $0x20] sm:$0xff]
          %v567 = vld [vmem:[%s423 + $0x28] sm:$0xff]
          %v568 = vld [vmem:[%s423 + $0x30] sm:$0xff]
          %v569 = vld [vmem:[%s423 + $0x38] sm:$0xff]
          %570 = vst [vmem:[%s476] sm:$0xff] %v562
          %571 = vst [vmem:[%s476 + $0x8] sm:$0xff] %v563
          %572 = vst [vmem:[%s476 + $0x10] sm:$0xff] %v564
          %573 = vst [vmem:[%s476 + $0x18] sm:$0xff] %v565
          %574 = vst [vmem:[%s476 + $0x20] sm:$0xff] %v566
          %575 = vst [vmem:[%s476 + $0x28] sm:$0xff] %v567
          %576 = vst [vmem:[%s476 + $0x30] sm:$0xff] %v568
          %577 = vst [vmem:[%s476 + $0x38] sm:$0xff] %v569
        $region56: #{lif_population_run.1} parent=35 // pred_fallthru
          _
        %v578 = vld [vmem:[%s396] sm:$0xff]
        %v579 = vld [vmem:[%s396 + $0x8] sm:$0xff]
        %v580 = vld [vmem:[%s396 + $0x10] sm:$0xff]
        %v581 = vld [vmem:[%s396 + $0x18] sm:$0xff]
        %v582 = vld [vmem:[%s396 + $0x20] sm:$0xff]
        %v583 = vld [vmem:[%s396 + $0x28] sm:$0xff]
        %v584 = vld [vmem:[%s396 + $0x30] sm:$0xff]
        %v585 = vld [vmem:[%s396 + $0x38] sm:$0xff]
        %v586 = vld [vmem:[%s462] sm:$0xff]
        %v587 = vld [vmem:[%s462 + $0x8] sm:$0xff]
        %v588 = vld [vmem:[%s462 + $0x10] sm:$0xff]
        %v589 = vld [vmem:[%s462 + $0x18] sm:$0xff]
        %v590 = vld [vmem:[%s462 + $0x20] sm:$0xff]
        %v591 = vld [vmem:[%s462 + $0x28] sm:$0xff]
        %v592 = vld [vmem:[%s462 + $0x30] sm:$0xff]
        %v593 = vld [vmem:[%s462 + $0x38] sm:$0xff]
        %v594 = vld [vmem:[%s469] sm:$0xff]
        %v595 = vld [vmem:[%s469 + $0x8] sm:$0xff]
        %v596 = vld [vmem:[%s469 + $0x10] sm:$0xff]
        %v597 = vld [vmem:[%s469 + $0x18] sm:$0xff]
        %v598 = vld [vmem:[%s469 + $0x20] sm:$0xff]
        %v599 = vld [vmem:[%s469 + $0x28] sm:$0xff]
        %v600 = vld [vmem:[%s469 + $0x30] sm:$0xff]
        %v601 = vld [vmem:[%s469 + $0x38] sm:$0xff]
        %v602 = vld [vmem:[%s476] sm:$0xff]
        %v603 = vld [vmem:[%s476 + $0x8] sm:$0xff]
        %v604 = vld [vmem:[%s476 + $0x10] sm:$0xff]
        %v605 = vld [vmem:[%s476 + $0x18] sm:$0xff]
        %v606 = vld [vmem:[%s476 + $0x20] sm:$0xff]
        %v607 = vld [vmem:[%s476 + $0x28] sm:$0xff]
        %v608 = vld [vmem:[%s476 + $0x30] sm:$0xff]
        %v609 = vld [vmem:[%s476 + $0x38] sm:$0xff]
        %v610 = vsub.f32 %v586, -62.0
        %v611 = vsub.f32 %v587, -62.0
        %v612 = vsub.f32 %v588, -62.0
        %v613 = vsub.f32 %v589, -62.0
        %v614 = vsub.f32 %v590, -62.0
        %v615 = vsub.f32 %v591, -62.0
        %v616 = vsub.f32 %v592, -62.0
        %v617 = vsub.f32 %v593, -62.0
        %v618 = vmul.f32 %v610, 0.9990005
        %v619 = vmul.f32 %v611, 0.9990005
        %v620 = vmul.f32 %v612, 0.9990005
        %v621 = vmul.f32 %v613, 0.9990005
        %v622 = vmul.f32 %v614, 0.9990005
        %v623 = vmul.f32 %v615, 0.9990005
        %v624 = vmul.f32 %v616, 0.9990005
        %v625 = vmul.f32 %v617, 0.9990005
        %v626 = vadd.f32 %v618, -62.0
        %v627 = vadd.f32 %v619, -62.0
        %v628 = vadd.f32 %v620, -62.0
        %v629 = vadd.f32 %v621, -62.0
        %v630 = vadd.f32 %v622, -62.0
        %v631 = vadd.f32 %v623, -62.0
        %v632 = vadd.f32 %v624, -62.0
        %v633 = vadd.f32 %v625, -62.0
        %vm634 = vcmp.gt.f32.partialorder %v594, 0.0
        %vm635 = vcmp.gt.f32.partialorder %v595, 0.0
        %vm636 = vcmp.gt.f32.partialorder %v596, 0.0
        %vm637 = vcmp.gt.f32.partialorder %v597, 0.0
        %vm638 = vcmp.gt.f32.partialorder %v598, 0.0
        %vm639 = vcmp.gt.f32.partialorder %v599, 0.0
        %vm640 = vcmp.gt.f32.partialorder %v600, 0.0
        %vm641 = vcmp.gt.f32.partialorder %v601, 0.0
        %v642 = vsel %vm634, 0.0, %v578
        %v643 = vsel %vm635, 0.0, %v579
        %v644 = vsel %vm636, 0.0, %v580
        %v645 = vsel %vm637, 0.0, %v581
        %v646 = vsel %vm638, 0.0, %v582
        %v647 = vsel %vm639, 0.0, %v583
        %v648 = vsel %vm640, 0.0, %v584
        %v649 = vsel %vm641, 0.0, %v585
        %v650 = vadd.f32 %v626, %v642
        %v651 = vadd.f32 %v627, %v643
        %v652 = vadd.f32 %v628, %v644
        %v653 = vadd.f32 %v629, %v645
        %v654 = vadd.f32 %v630, %v646
        %v655 = vadd.f32 %v631, %v647
        %v656 = vadd.f32 %v632, %v648
        %v657 = vadd.f32 %v633, %v649
        %vm658 = vcmp.ge.f32.partialorder %v650, -52.0
        %vm659 = vcmp.ge.f32.partialorder %v651, -52.0
        %vm660 = vcmp.ge.f32.partialorder %v652, -52.0
        %vm661 = vcmp.ge.f32.partialorder %v653, -52.0
        %vm662 = vcmp.ge.f32.partialorder %v654, -52.0
        %vm663 = vcmp.ge.f32.partialorder %v655, -52.0
        %vm664 = vcmp.ge.f32.partialorder %v656, -52.0
        %vm665 = vcmp.ge.f32.partialorder %v657, -52.0
        %v666 = vsub.f32 %v594, 0.1
        %v667 = vsub.f32 %v595, 0.1
        %v668 = vsub.f32 %v596, 0.1
        %v669 = vsub.f32 %v597, 0.1
        %v670 = vsub.f32 %v598, 0.1
        %v671 = vsub.f32 %v599, 0.1
        %v672 = vsub.f32 %v600, 0.1
        %v673 = vsub.f32 %v601, 0.1
        %v674 = vsel %vm658, 5.0, %v666
        %v675 = vsel %vm659, 5.0, %v667
        %v676 = vsel %vm660, 5.0, %v668
        %v677 = vsel %vm661, 5.0, %v669
        %v678 = vsel %vm662, 5.0, %v670
        %v679 = vsel %vm663, 5.0, %v671
        %v680 = vsel %vm664, 5.0, %v672
        %v681 = vsel %vm665, 5.0, %v673
        %v682 = vsel %vm658, -62.0, %v650
        %v683 = vsel %vm659, -62.0, %v651
        %v684 = vsel %vm660, -62.0, %v652
        %v685 = vsel %vm661, -62.0, %v653
        %v686 = vsel %vm662, -62.0, %v654
        %v687 = vsel %vm663, -62.0, %v655
        %v688 = vsel %vm664, -62.0, %v656
        %v689 = vsel %vm665, -62.0, %v657
        %v690 = vmul.f32 %v602, 0.99004984
        %v691 = vmul.f32 %v603, 0.99004984
        %v692 = vmul.f32 %v604, 0.99004984
        %v693 = vmul.f32 %v605, 0.99004984
        %v694 = vmul.f32 %v606, 0.99004984
        %v695 = vmul.f32 %v607, 0.99004984
        %v696 = vmul.f32 %v608, 0.99004984
        %v697 = vmul.f32 %v609, 0.99004984
        %v698 = vsel %vm658, 1.0, %v690
        %v699 = vsel %vm659, 1.0, %v691
        %v700 = vsel %vm660, 1.0, %v692
        %v701 = vsel %vm661, 1.0, %v693
        %v702 = vsel %vm662, 1.0, %v694
        %v703 = vsel %vm663, 1.0, %v695
        %v704 = vsel %vm664, 1.0, %v696
        %v705 = vsel %vm665, 1.0, %v697
        %706 = vst [vmem:[%s462] sm:$0xff] %v682
        %707 = vst [vmem:[%s462 + $0x8] sm:$0xff] %v683
        %708 = vst [vmem:[%s462 + $0x10] sm:$0xff] %v684
        %709 = vst [vmem:[%s462 + $0x18] sm:$0xff] %v685
        %710 = vst [vmem:[%s462 + $0x20] sm:$0xff] %v686
        %711 = vst [vmem:[%s462 + $0x28] sm:$0xff] %v687
        %712 = vst [vmem:[%s462 + $0x30] sm:$0xff] %v688
        %713 = vst [vmem:[%s462 + $0x38] sm:$0xff] %v689
        %714 = vst [vmem:[%s469] sm:$0xff] %v674
        %715 = vst [vmem:[%s469 + $0x8] sm:$0xff] %v675
        %716 = vst [vmem:[%s469 + $0x10] sm:$0xff] %v676
        %717 = vst [vmem:[%s469 + $0x18] sm:$0xff] %v677
        %718 = vst [vmem:[%s469 + $0x20] sm:$0xff] %v678
        %719 = vst [vmem:[%s469 + $0x28] sm:$0xff] %v679
        %720 = vst [vmem:[%s469 + $0x30] sm:$0xff] %v680
        %721 = vst [vmem:[%s469 + $0x38] sm:$0xff] %v681
        %722 = vst [vmem:[%s476] sm:$0xff] %v698
        %723 = vst [vmem:[%s476 + $0x8] sm:$0xff] %v699
        %724 = vst [vmem:[%s476 + $0x10] sm:$0xff] %v700
        %725 = vst [vmem:[%s476 + $0x18] sm:$0xff] %v701
        %726 = vst [vmem:[%s476 + $0x20] sm:$0xff] %v702
        %727 = vst [vmem:[%s476 + $0x28] sm:$0xff] %v703
        %728 = vst [vmem:[%s476 + $0x30] sm:$0xff] %v704
        %729 = vst [vmem:[%s476 + $0x38] sm:$0xff] %v705
        %vm730 = vmpackc.low %vm659, %vm658
        %vm731 = vmpackc.low %vm661, %vm660
        %vm732 = vmpackc.even %vm731, %vm730
        %vm733 = vmpackc.low %vm663, %vm662
        %vm734 = vmpackc.low %vm665, %vm664
        %vm735 = vmpackc.even %vm734, %vm733
        %v736 = vsel %vm732, 16843009, 0
        %v737 = vsel %vm735, 16843009, 0
        %738 = vst [vmem:[%s483] sm:$0xff] %v736
        %739 = vst [vmem:[%s483 + $0x8] sm:$0xff] %v737
        %s740 = sand.u32 %s163, 1
        %s741 = scalar_lea.sflag [#allocation4], %s740
        %s742 = sand.u32 %s163, 1
        %s743 = smul.addr %s742, 64
        %s744 = scalar_lea.vmem [#allocation10], %s743
        %s745 = sand.u32 %s37, 1
        %s746 = scalar_lea.sflag [#allocation12], %s745
        %s747 = sand.u32 %s189, 1
        %s748 = smul.addr %s747, 64
        %s749 = scalar_lea.vmem [#allocation11], %s748
        %s750 = sand.u32 %s37, 1
        %s751 = scalar_lea.sflag [#allocation12], %s750
        %s752 = sand.u32 %s215, 1
        %s753 = smul.addr %s752, 64
        %s754 = scalar_lea.vmem [#allocation13], %s753
        %s755 = sand.u32 %s243, 1
        %s756 = scalar_lea.sflag [#allocation15], %s755
        %s757 = sand.u32 %s243, 1
        %s758 = smul.addr %s757, 16
        %s759 = scalar_lea.vmem [#allocation14], %s758
        // Predicated region
        $region57: #{lif_population_run.1} parent=35 // pred_check
          %p760 = pneg %p173
        $region58: #{lif_population_run.1} parent=35 // pred_check_branch
          %762 = sbr.rel (%p760) target = $region60
        $region59: #{lif_population_run.1} parent=35 // pred_region
          %s763 = smul.u32 8, %s41
          %s764 = ssub.s32 12, %s763
          %p765 = scmp.lt.s32.totalorder %s764, 8
          %s766 = scalar_select %p765, %s764, 8
          %s767 = smul.u32 128, %s766
          %s769 = ssub.s32 1024, %s767
          %770 = vsyncadd %s741, %s769
          %p771 = scmp.ne.s32.totalorder 0, %s767
          %s772 = smul.addr %s763, 128
          %s773 = scalar_lea.hbm %s4, %s772
          %s774 = smul.u32 8, %s766
          %s775 = sshll.u32 %s744, 4
          %s776 = int_to_ptr.vmem [resolvable:$true] %s775
          %s777 = sshll.u32 %s774, 4
          %781 = dma.vmem_to_hbm [thread:$0]  (%p771), %s776, %s777, %s773, %s741, 128, 128, 8
        $region60: #{lif_population_run.1} parent=35 // pred_fallthru
          _
        // Predicated region
        $region61: #{lif_population_run.1} parent=35 // pred_check
          %p782 = pneg %p199
        $region62: #{lif_population_run.1} parent=35 // pred_check_branch
          %784 = sbr.rel (%p782) target = $region64
        $region63: #{lif_population_run.1} parent=35 // pred_region
          %s785 = smul.u32 8, %s41
          %s786 = ssub.s32 12, %s785
          %p787 = scmp.lt.s32.totalorder %s786, 8
          %s788 = scalar_select %p787, %s786, 8
          %s789 = smul.u32 128, %s788
          %s791 = ssub.s32 1024, %s789
          %792 = vsyncadd %s746, %s791
          %p793 = scmp.ne.s32.totalorder 0, %s789
          %s794 = smul.addr %s785, 128
          %s795 = scalar_lea.hbm %s5, %s794
          %s796 = smul.u32 8, %s788
          %s797 = sshll.u32 %s749, 4
          %s798 = int_to_ptr.vmem [resolvable:$true] %s797
          %s799 = sshll.u32 %s796, 4
          %803 = dma.vmem_to_hbm [thread:$0]  (%p793), %s798, %s799, %s795, %s746, 128, 128, 8
        $region64: #{lif_population_run.1} parent=35 // pred_fallthru
          _
        // Predicated region
        $region65: #{lif_population_run.1} parent=35 // pred_check
          %p804 = pneg %p225
        $region66: #{lif_population_run.1} parent=35 // pred_check_branch
          %806 = sbr.rel (%p804) target = $region68
        $region67: #{lif_population_run.1} parent=35 // pred_region
          %s807 = smul.u32 8, %s41
          %s808 = ssub.s32 12, %s807
          %p809 = scmp.lt.s32.totalorder %s808, 8
          %s810 = scalar_select %p809, %s808, 8
          %s811 = smul.u32 128, %s810
          %s813 = ssub.s32 1024, %s811
          %814 = vsyncadd %s751, %s813
          %p815 = scmp.ne.s32.totalorder 0, %s811
          %s816 = smul.addr %s807, 128
          %s817 = scalar_lea.hbm %s6, %s816
          %s818 = smul.u32 8, %s810
          %s819 = sshll.u32 %s754, 4
          %s820 = int_to_ptr.vmem [resolvable:$true] %s819
          %s821 = sshll.u32 %s818, 4
          %825 = dma.vmem_to_hbm [thread:$0]  (%p815), %s820, %s821, %s817, %s751, 128, 128, 8
        $region68: #{lif_population_run.1} parent=35 // pred_fallthru
          _
        // Predicated region
        $region69: #{lif_population_run.1} parent=35 // pred_check
          %p826 = pneg %p253
        $region70: #{lif_population_run.1} parent=35 // pred_check_branch
          %828 = sbr.rel (%p826) target = $region72
        $region71: #{lif_population_run.1} parent=35 // pred_region
          %s829 = smul.u32 2, %s41
          %s830 = ssub.s32 3, %s829
          %p831 = scmp.lt.s32.totalorder %s830, 2
          %s832 = scalar_select %p831, %s830, 2
          %s833 = smul.u32 128, %s832
          %s835 = ssub.s32 256, %s833
          %836 = vsyncadd %s756, %s835
          %p837 = scmp.ne.s32.totalorder 0, %s833
          %s838 = smul.addr %s42, 3
          %s839 = sadd.s32 %s829, %s838
          %s840 = smul.addr %s839, 128
          %s841 = scalar_lea.hbm %s7, %s840
          %s842 = smul.u32 8, %s832
          %s843 = sshll.u32 %s759, 4
          %s844 = int_to_ptr.vmem [resolvable:$true] %s843
          %s845 = sshll.u32 %s842, 4
          %849 = dma.vmem_to_hbm [thread:$0]  (%p837), %s844, %s845, %s841, %s756, 128, 128, 8
        $region72: #{lif_population_run.1} parent=35 // pred_fallthru
          _
      $region36: #{lif_population_run.1} parent=5 // pred_fallthru
        _
      %p850 = scmp.le.s32.totalorder 2, %s32
      // Predicated region
      $region73: #{lif_population_run.1} parent=5 // pred_check
        %p851 = pneg %p850
      $region74: #{lif_population_run.1} parent=5 // pred_check_branch
        %853 = sbr.rel (%p851) target = $region76
      $region75: #{lif_population_run.1} parent=5 // pred_region
        %s854 = ssub.s32 %s32, 2
        // Predicated region
        $region77: #{lif_population_run.1} parent=75 // pred_check
          %p855 = pneg %p179
        $region78: #{lif_population_run.1} parent=75 // pred_check_branch
          %857 = sbr.rel (%p855) target = $region80
        $region79: #{lif_population_run.1} parent=75 // pred_region
          %s858 = sand.u32 %s164, 1
          %s859 = scalar_lea.sflag [#allocation4], %s858
          %s860 = sand.u32 %s164, 1
          %s861 = smul.addr %s860, 64
          %s862 = scalar_lea.vmem [#allocation10], %s861
          %863 = dma.done %s859, 1024
        $region80: #{lif_population_run.1} parent=75 // pred_fallthru
          _
        // Predicated region
        $region81: #{lif_population_run.1} parent=75 // pred_check
          %p864 = pneg %p205
        $region82: #{lif_population_run.1} parent=75 // pred_check_branch
          %866 = sbr.rel (%p864) target = $region84
        $region83: #{lif_population_run.1} parent=75 // pred_region
          %s867 = sand.u32 %s38, 1
          %s868 = scalar_lea.sflag [#allocation12], %s867
          %s869 = sand.u32 %s190, 1
          %s870 = smul.addr %s869, 64
          %s871 = scalar_lea.vmem [#allocation11], %s870
          %872 = dma.done %s868, 1024
        $region84: #{lif_population_run.1} parent=75 // pred_fallthru
          _
        // Predicated region
        $region85: #{lif_population_run.1} parent=75 // pred_check
          %p873 = pneg %p231
        $region86: #{lif_population_run.1} parent=75 // pred_check_branch
          %875 = sbr.rel (%p873) target = $region88
        $region87: #{lif_population_run.1} parent=75 // pred_region
          %s876 = sand.u32 %s38, 1
          %s877 = scalar_lea.sflag [#allocation12], %s876
          %s878 = sand.u32 %s216, 1
          %s879 = smul.addr %s878, 64
          %s880 = scalar_lea.vmem [#allocation13], %s879
          %881 = dma.done %s877, 1024
        $region88: #{lif_population_run.1} parent=75 // pred_fallthru
          _
        // Predicated region
        $region89: #{lif_population_run.1} parent=75 // pred_check
          %p882 = pneg %p259
        $region90: #{lif_population_run.1} parent=75 // pred_check_branch
          %884 = sbr.rel (%p882) target = $region92
        $region91: #{lif_population_run.1} parent=75 // pred_region
          %s885 = sand.u32 %s244, 1
          %s886 = scalar_lea.sflag [#allocation15], %s885
          %s887 = sand.u32 %s244, 1
          %s888 = smul.addr %s887, 16
          %s889 = scalar_lea.vmem [#allocation14], %s888
          %890 = dma.done %s886, 256
        $region92: #{lif_population_run.1} parent=75 // pred_fallthru
          _
      $region76: #{lif_population_run.1} parent=5 // pred_fallthru
        _
    $region6: #{lif_population_run.1} parent=1 // loop_footer
      %s36 = sadd.s32 1, %s32
    $region7: #{lif_population_run.1} parent=1 // loop_footer_branch
      %31 = sbr.rel target = $region3
    $region8: #{lif_population_run.1} parent=1 // loop_exit
      _
    %891 = vsyncpa [#allocation3], 1
    %s892 = scalar_lea.sflag [#allocation3], 1
    %893 = vsyncpa %s892, 1
    %894 = vsyncpa [#allocation6], 1
    %s895 = scalar_lea.sflag [#allocation6], 1
    %896 = vsyncpa %s895, 1
    %897 = vsyncpa [#allocation9], 1
    %s898 = scalar_lea.sflag [#allocation9], 1
    %899 = vsyncpa %s898, 1
    %900 = vsyncpa [#allocation4], 1
    %s901 = scalar_lea.sflag [#allocation4], 1
    %902 = vsyncpa %s901, 1
    %903 = vsyncpa [#allocation12], 1
    %s904 = scalar_lea.sflag [#allocation12], 1
    %905 = vsyncpa %s904, 1
    %906 = vsyncpa [#allocation15], 1
    %s907 = scalar_lea.sflag [#allocation15], 1
    %908 = vsyncpa %s907, 1

</llo_original>
